<compile_context>
chip_gen: v7x
topology: tpu7x:2x2x1
jax: 0.10.0
libtpu: 0.0.40
codegen_flags: <defaults>
</compile_context>

<pallas_src>
import jax
import jax.numpy as jnp
from jax.experimental import pallas as pl
from jax.experimental.pallas import tpu as pltpu


# ----------------------------------------------------------------------------
# Kernel
# ----------------------------------------------------------------------------
def _make_err_encoder_kernel(actv_fn):
    def kernel(x_ref, w1_ref, b1_ref, w2_ref, b2_ref, w3_ref, b3_ref, o_ref):
        # fc1 (per-window, via block-diagonal weight): (TB, W*D1) @ (W*D1, W*H)
        z1 = jnp.dot(x_ref[...], w1_ref[...], preferred_element_type=jnp.float32)
        h1 = actv_fn(z1 + b1_ref[...])

        # fc2 (per-window, via block-diagonal weight): (TB, W*H) @ (W*H, W*H)
        z2 = jnp.dot(h1.astype(w2_ref.dtype), w2_ref[...],
                     preferred_element_type=jnp.float32)
        h2 = actv_fn(z2 + b2_ref[...])

        # fc3 over the flattened (W*H) axis: (TB, W*H) @ (W*H, O_pad)
        z3 = jnp.dot(h2.astype(w3_ref.dtype), w3_ref[...],
                     preferred_element_type=jnp.float32)
        out = actv_fn(z3 + b3_ref[...])

        o_ref[...] = out.astype(o_ref.dtype)

    return kernel


# ----------------------------------------------------------------------------
# Wrapper helpers
# ----------------------------------------------------------------------------
def _round_up(n, m):
    return ((n + m - 1) // m) * m


def _block_diag(block, n):
    """(K, N) -> (n*K, n*N) with `block` repeated on the diagonal."""
    eye = jnp.eye(n, dtype=block.dtype)
    return jnp.kron(eye, block)


def _is_two_core_chip():
    """True on v7x-class chips (2 TensorCores per chip)."""
    try:
        kind = jax.devices()[0].device_kind.lower()
        return "v7" in kind
    except Exception:
        return False


def _choose_batch_tile(b_pad, two_cores, max_rows=256):
    """Pick a multiple-of-8 divisor of b_pad as the batch tile.

    v5e/v6e (1 TC): the grid is a sequential loop (~0.35us/step), so prefer a
    single step, capped at `max_rows` rows per block for vreg/VMEM pressure.
    v7x (2 TCs): keep an even step count so the 'parallel' batch axis shards
    across both cores, but only when each step still has >= 256 rows of work.
    """
    divs = [tb for tb in range(8, b_pad + 1, 8) if b_pad % tb == 0]
    fits = [tb for tb in divs if tb <= max_rows] or [min(divs)]
    if two_cores:
        split = [tb for tb in fits if (b_pad // tb) % 2 == 0 and tb >= 256]
        if split:
            return max(split)
    return max(fits)


# ----------------------------------------------------------------------------
# Public entry point
# ----------------------------------------------------------------------------
def err_encoder(Ets, w1, b1, w2, b2, w3, b3, actv_type="relu", use_bf16=False):
    """Ets: (B, W, D1). PyTorch Linear params: w1 (H,D1), w2 (H,H), w3 (O, W*H)."""
    B, W, D1 = Ets.shape
    H = w1.shape[0]
    O = w3.shape[0]

    actv_fn = (lambda v: jnp.maximum(v, 0.0)) if actv_type == "relu" else jnp.tanh

    # ---- one-time, cheap XLA glue outside the kernel -----------------------
    # Fold the window axis into the lane dimension:
    #   x_flat[b, w*D1 + d] = Ets[b, w, d]            (free contiguous reshape)
    x_flat = Ets.reshape(B, W * D1)
    w1_bd = _block_diag(w1.T, W)                      # (W*D1, W*H)
    w2_bd = _block_diag(w2.T, W)                      # (W*H,  W*H)
    b1_bd = jnp.tile(b1, W).reshape(1, W * H)
    b2_bd = jnp.tile(b2, W).reshape(1, W * H)

    # Lane-dense output: zero-pad O up to a multiple of 128.
    O_pad = _round_up(O, 128)
    w3_t = jnp.zeros((W * H, O_pad), w3.dtype).at[:, :O].set(w3.T)
    b3_p = jnp.zeros((1, O_pad), b3.dtype).at[0, :O].set(b3)

    # Optional bf16 MXU inputs (f32 accumulation / bias / activation).
    mm_dtype = jnp.bfloat16 if use_bf16 else x_flat.dtype
    x_flat = x_flat.astype(mm_dtype)
    w1_bd = w1_bd.astype(mm_dtype)
    w2_bd = w2_bd.astype(mm_dtype)
    w3_t = w3_t.astype(mm_dtype)

    # Pad the batch to a multiple of 8 so tiles stay (8,128)-aligned.
    B_pad = _round_up(B, 8)
    if B_pad != B:
        x_flat = jnp.pad(x_flat, ((0, B_pad - B), (0, 0)))

    TB = _choose_batch_tile(B_pad, two_cores=_is_two_core_chip())
    assert B_pad % TB == 0 and TB % 8 == 0

    kernel = _make_err_encoder_kernel(actv_fn)

    out = pl.pallas_call(
        kernel,
        out_shape=jax.ShapeDtypeStruct((B_pad, O_pad), Ets.dtype),
        grid_spec=pltpu.PrefetchScalarGridSpec(
            num_scalar_prefetch=0,
            grid=(B_pad // TB,),
            in_specs=[
                pl.BlockSpec((TB, W * D1), lambda i: (i, 0)),       # x
                pl.BlockSpec((W * D1, W * H), lambda i: (0, 0)),    # fc1 block-diag
                pl.BlockSpec((1, W * H), lambda i: (0, 0)),         # fc1 bias (tiled)
                pl.BlockSpec((W * H, W * H), lambda i: (0, 0)),     # fc2 block-diag
                pl.BlockSpec((1, W * H), lambda i: (0, 0)),         # fc2 bias (tiled)
                pl.BlockSpec((W * H, O_pad), lambda i: (0, 0)),     # fc3 weight (padded)
                pl.BlockSpec((1, O_pad), lambda i: (0, 0)),         # fc3 bias (padded)
            ],
            out_specs=pl.BlockSpec((TB, O_pad), lambda i: (i, 0)),
        ),
        compiler_params=pltpu.CompilerParams(
            dimension_semantics=("parallel",)),
    )(x_flat, w1_bd, b1_bd, w2_bd, b2_bd, w3_t, b3_p)

    return out[:B, :O]


# ----------------------------------------------------------------------------
# Pure-JAX reference mirroring the PyTorch forward
# ----------------------------------------------------------------------------
def _reference(Ets, w1, b1, w2, b2, w3, b3, actv_type="relu"):
    actv = jax.nn.relu if actv_type == "relu" else jnp.tanh
    B = Ets.shape[0]
    h1 = actv(Ets @ w1.T + b1)
    h2 = actv(h1 @ w2.T + b2).reshape(B, -1)
    return actv(h2 @ w3.T + b3)


if __name__ == "__main__":
    # B x W x D1 input; hidden H; output O  (W = input_dim2, D1 = input_dim1)
    B, W, D1, H, O = 16, 8, 16, 32, 24
    key = jax.random.PRNGKey(0)
    ks = jax.random.split(key, 7)

    def uni(k, shape, fan_in):
        bound = 1.0 / (fan_in ** 0.5)
        return jax.random.uniform(k, shape, minval=-bound, maxval=bound,
                                  dtype=jnp.float32)

    Ets = jax.random.normal(ks[0], (B, W, D1), dtype=jnp.float32)
    # PyTorch Linear shapes: fc1 (H, D1), fc2 (H, H), fc3 (O, W*H)
    w1 = uni(ks[1], (H, D1), D1)
    b1 = uni(ks[2], (H,), D1)
    w2 = uni(ks[3], (H, H), H)
    b2 = uni(ks[4], (H,), H)
    w3 = uni(ks[5], (O, W * H), W * H)
    b3 = uni(ks[6], (O,), W * H)

    # f32 MXU path (tight tolerance).
    out = err_encoder(Ets, w1, b1, w2, b2, w3, b3, actv_type="relu")
    jax.block_until_ready(out)
    ref = _reference(Ets, w1, b1, w2, b2, w3, b3, actv_type="relu")
    assert out.shape == (B, O), out.shape
    assert jnp.allclose(out, ref, atol=1e-4, rtol=1e-4), \
        float(jnp.max(jnp.abs(out - ref)))

    # bf16 MXU-input fast path (looser tolerance).
    out_bf16 = err_encoder(Ets, w1, b1, w2, b2, w3, b3, actv_type="relu",
                           use_bf16=True)
    jax.block_until_ready(out_bf16)
    assert jnp.allclose(out_bf16, ref, atol=2e-2, rtol=2e-2), \
        float(jnp.max(jnp.abs(out_bf16 - ref)))

    # tanh activation + batch-padding path (B not a multiple of 8).
    out_t = err_encoder(Ets[:6], w1, b1, w2, b2, w3, b3, actv_type="tanh")
    jax.block_until_ready(out_t)
    ref_t = _reference(Ets[:6], w1, b1, w2, b2, w3, b3, actv_type="tanh")
    assert out_t.shape == (6, O), out_t.shape
    assert jnp.allclose(out_t, ref_t, atol=1e-4, rtol=1e-4), \
        float(jnp.max(jnp.abs(out_t - ref_t)))

    print("KERNEL_OK")
</pallas_src>

<mosaic_0001>
module attributes {stable_mosaic.version = 11 : i64} {
  func.func @kernel(%arg0: i32, %arg1: memref<16x128xf32, #tpu.memory_space<vmem>>, %arg2: memref<128x256xf32, #tpu.memory_space<vmem>>, %arg3: memref<1x256xf32, #tpu.memory_space<vmem>>, %arg4: memref<256x256xf32, #tpu.memory_space<vmem>>, %arg5: memref<1x256xf32, #tpu.memory_space<vmem>>, %arg6: memref<256x128xf32, #tpu.memory_space<vmem>>, %arg7: memref<1x128xf32, #tpu.memory_space<vmem>>, %arg8: memref<16x128xf32, #tpu.memory_space<vmem>>) attributes {dimension_semantics = [#tpu.dimension_semantics<parallel>], iteration_bounds = array<i64: 1>, scalar_prefetch = 0 : i64, scratch_operands = 0 : i64, tpu.core_type = #tpu.core_type<tc>, window_params = [{transform_indices = @transform_0, window_bounds = array<i64: 16, 128>}, {pipeline_mode = #tpu.pipeline_mode<synchronous>, transform_indices = @transform_1, window_bounds = array<i64: 128, 256>}, {pipeline_mode = #tpu.pipeline_mode<synchronous>, transform_indices = @transform_2, window_bounds = array<i64: 1, 256>}, {pipeline_mode = #tpu.pipeline_mode<synchronous>, transform_indices = @transform_3, window_bounds = array<i64: 256, 256>}, {pipeline_mode = #tpu.pipeline_mode<synchronous>, transform_indices = @transform_4, window_bounds = array<i64: 1, 256>}, {pipeline_mode = #tpu.pipeline_mode<synchronous>, transform_indices = @transform_5, window_bounds = array<i64: 256, 128>}, {pipeline_mode = #tpu.pipeline_mode<synchronous>, transform_indices = @transform_6, window_bounds = array<i64: 1, 128>}, {transform_indices = @transform_7, window_bounds = array<i64: 16, 128>}]} {
    %c0 = arith.constant 0 : index
    %c0_0 = arith.constant 0 : index
    %0 = vector.load %arg1[%c0, %c0_0] : memref<16x128xf32, #tpu.memory_space<vmem>>, vector<16x128xf32>
    %c0_1 = arith.constant 0 : index
    %c0_2 = arith.constant 0 : index
    %1 = vector.load %arg2[%c0_1, %c0_2] : memref<128x256xf32, #tpu.memory_space<vmem>>, vector<128x256xf32>
    %cst = arith.constant dense<0.000000e+00> : vector<16x256xf32>
    %2 = tpu.matmul %0, %1, %cst {dimension_numbers = #tpu.dot_dimension_numbers<[1], [0], [0], [1], [0, 0, 1, 1], [], []>} : vector<16x128xf32>, vector<128x256xf32>, vector<16x256xf32> -> vector<16x256xf32>
    %c0_3 = arith.constant 0 : index
    %c0_4 = arith.constant 0 : index
    %3 = vector.load %arg3[%c0_3, %c0_4] : memref<1x256xf32, #tpu.memory_space<vmem>>, vector<1x256xf32>
    %4 = vector.broadcast %3 : vector<1x256xf32> to vector<16x256xf32>
    %5 = arith.addf %2, %4 : vector<16x256xf32>
    %cst_5 = arith.constant 0.000000e+00 : f32
    %6 = vector.broadcast %cst_5 : f32 to vector<16x256xf32>
    %7 = arith.maximumf %5, %6 : vector<16x256xf32>
    %c0_6 = arith.constant 0 : index
    %c0_7 = arith.constant 0 : index
    %8 = vector.load %arg4[%c0_6, %c0_7] : memref<256x256xf32, #tpu.memory_space<vmem>>, vector<256x256xf32>
    %cst_8 = arith.constant dense<0.000000e+00> : vector<16x256xf32>
    %9 = tpu.matmul %7, %8, %cst_8 {dimension_numbers = #tpu.dot_dimension_numbers<[1], [0], [0], [1], [0, 0, 1, 1], [], []>} : vector<16x256xf32>, vector<256x256xf32>, vector<16x256xf32> -> vector<16x256xf32>
    %c0_9 = arith.constant 0 : index
    %c0_10 = arith.constant 0 : index
    %10 = vector.load %arg5[%c0_9, %c0_10] : memref<1x256xf32, #tpu.memory_space<vmem>>, vector<1x256xf32>
    %11 = vector.broadcast %10 : vector<1x256xf32> to vector<16x256xf32>
    %12 = arith.addf %9, %11 : vector<16x256xf32>
    %cst_11 = arith.constant 0.000000e+00 : f32
    %13 = vector.broadcast %cst_11 : f32 to vector<16x256xf32>
    %14 = arith.maximumf %12, %13 : vector<16x256xf32>
    %c0_12 = arith.constant 0 : index
    %c0_13 = arith.constant 0 : index
    %15 = vector.load %arg6[%c0_12, %c0_13] : memref<256x128xf32, #tpu.memory_space<vmem>>, vector<256x128xf32>
    %cst_14 = arith.constant dense<0.000000e+00> : vector<16x128xf32>
    %16 = tpu.matmul %14, %15, %cst_14 {dimension_numbers = #tpu.dot_dimension_numbers<[1], [0], [0], [1], [0, 0, 1, 1], [], []>} : vector<16x256xf32>, vector<256x128xf32>, vector<16x128xf32> -> vector<16x128xf32>
    %c0_15 = arith.constant 0 : index
    %c0_16 = arith.constant 0 : index
    %17 = vector.load %arg7[%c0_15, %c0_16] : memref<1x128xf32, #tpu.memory_space<vmem>>, vector<1x128xf32>
    %18 = vector.broadcast %17 : vector<1x128xf32> to vector<16x128xf32>
    %19 = arith.addf %16, %18 : vector<16x128xf32>
    %cst_17 = arith.constant 0.000000e+00 : f32
    %20 = vector.broadcast %cst_17 : f32 to vector<16x128xf32>
    %21 = arith.maximumf %19, %20 : vector<16x128xf32>
    %c0_18 = arith.constant 0 : index
    %c0_19 = arith.constant 0 : index
    %22 = vector.load %arg8[%c0_18, %c0_19] : memref<16x128xf32, #tpu.memory_space<vmem>>, vector<16x128xf32>
    tpu.vector_store %arg8[%c0_18, %c0_19], %21 {strides = array<i32>} : memref<16x128xf32, #tpu.memory_space<vmem>>, vector<16x128xf32>,
    return
  }
  func.func @transform_0(%arg0: i32) -> (i32, i32) {
    %c0_i32 = arith.constant 0 : i32
    %c0_i32_0 = arith.constant 0 : i32
    return %arg0, %c0_i32 : i32, i32
  }
  func.func @transform_1(%arg0: i32) -> (i32, i32) {
    %c0_i32 = arith.constant 0 : i32
    %c0_i32_0 = arith.constant 0 : i32
    %c0_i32_1 = arith.constant 0 : i32
    return %c0_i32, %c0_i32_0 : i32, i32
  }
  func.func @transform_2(%arg0: i32) -> (i32, i32) {
    %c0_i32 = arith.constant 0 : i32
    %c0_i32_0 = arith.constant 0 : i32
    %c0_i32_1 = arith.constant 0 : i32
    return %c0_i32, %c0_i32_0 : i32, i32
  }
  func.func @transform_3(%arg0: i32) -> (i32, i32) {
    %c0_i32 = arith.constant 0 : i32
    %c0_i32_0 = arith.constant 0 : i32
    %c0_i32_1 = arith.constant 0 : i32
    return %c0_i32, %c0_i32_0 : i32, i32
  }
  func.func @transform_4(%arg0: i32) -> (i32, i32) {
    %c0_i32 = arith.constant 0 : i32
    %c0_i32_0 = arith.constant 0 : i32
    %c0_i32_1 = arith.constant 0 : i32
    return %c0_i32, %c0_i32_0 : i32, i32
  }
  func.func @transform_5(%arg0: i32) -> (i32, i32) {
    %c0_i32 = arith.constant 0 : i32
    %c0_i32_0 = arith.constant 0 : i32
    %c0_i32_1 = arith.constant 0 : i32
    return %c0_i32, %c0_i32_0 : i32, i32
  }
  func.func @transform_6(%arg0: i32) -> (i32, i32) {
    %c0_i32 = arith.constant 0 : i32
    %c0_i32_0 = arith.constant 0 : i32
    %c0_i32_1 = arith.constant 0 : i32
    return %c0_i32, %c0_i32_0 : i32, i32
  }
  func.func @transform_7(%arg0: i32) -> (i32, i32) {
    %c0_i32 = arith.constant 0 : i32
    %c0_i32_0 = arith.constant 0 : i32
    return %arg0, %c0_i32 : i32, i32
  }
}

</mosaic_0001>

<llo_original>
// kernel: tpu_custom_call.1
$region0: #{tpu_custom_call.1}
  #allocation0 [shape = 'u32[]', space=smem, size = 0x4, offset = 0x4, fixed_abs, tag = 'smem constant byte address 0x4 - core index']
  #allocation1 [shape = 'u32[144,128]{1,0:T(1,128)}', space=vmem, size = 0x12000, scoped, tag = 'internal scratch']
  %s0 = inlined_call_operand.hbm [shape: f32[16,128], index: 0, kind: input, shape index: {}]
  %s1 = inlined_call_operand.hbm [shape: f32[128,256], index: 1, kind: input, shape index: {}]
  %s2 = inlined_call_operand.vmem [shape: f32[1,256], index: 2, kind: input, shape index: {}]
  %s3 = inlined_call_operand.hbm [shape: f32[256,256], index: 3, kind: input, shape index: {}]
  %s4 = inlined_call_operand.vmem [shape: f32[1,256], index: 4, kind: input, shape index: {}]
  %s5 = inlined_call_operand.hbm [shape: f32[256,128], index: 5, kind: input, shape index: {}]
  %s6 = inlined_call_operand.vmem [shape: f32[1,128], index: 6, kind: input, shape index: {}]
  %s7 = inlined_call_operand.hbm [shape: f32[16,128], index: 7, kind: output, shape index: {}]
  %s8 = sld [smem:[#allocation0]]
  $region54: #{tpu_custom_call.1} parent=0
    _
  %s10 = ssub.s32 1, %s8
  %s11 = scalar_select 0, %s10, %s8
  $region1: #{tpu_custom_call.1} parent=0
    #allocation2 [shape = 'u8[8192]{0}', space=vmem, size = 0x2000, scoped, tag = 'input window, operand 0, single buffered']
    #allocation3 [shape = 's32[1]{0}', space=sflag, size = 0x4, scoped, tag = 'scoped memory for tpu_custom_call.1']
    #allocation4 [shape = 's32[1]{0}', space=sflag, size = 0x4, scoped, tag = 'scoped memory for tpu_custom_call.1']
    #allocation5 [shape = 'u8[131072]{0}', space=vmem, size = 0x20000, scoped, tag = 'input window, operand 1, single buffered']
    #allocation6 [shape = 's32[1]{0}', space=sflag, size = 0x4, scoped, tag = 'scoped memory for tpu_custom_call.1']
    #allocation7 [shape = 'u8[262144]{0}', space=vmem, size = 0x40000, scoped, tag = 'input window, operand 3, single buffered']
    #allocation8 [shape = 'u8[131072]{0}', space=vmem, size = 0x20000, scoped, tag = 'input window, operand 5, single buffered']
    #allocation9 [shape = 's32[1]{0}', space=sflag, size = 0x4, scoped, tag = 'scoped memory for tpu_custom_call.1']
    #allocation10 [shape = 'u8[8192]{0}', space=vmem, size = 0x2000, scoped, tag = 'output window, operand 0, single buffered']
    %12 = vsyncpa [#allocation3], 0
    %13 = vsyncpa [#allocation6], 0
    %14 = vsyncpa [#allocation9], 0
    %15 = vsyncpa [#allocation4], 0
    // Predicated region
    $region2: #{tpu_custom_call.1} parent=1 // pred_check
      _
    $region3: #{tpu_custom_call.1} parent=1 // pred_check_branch
      %17 = sbr.rel (0) target = $region5
    $region4: #{tpu_custom_call.1} parent=1 // pred_region
      %s19 = ssub.s32 256, 256
      %20 = vsyncadd [#allocation3], %s19
      %s21 = sshll.u32 [#allocation2], 4
      %s22 = int_to_ptr.vmem [resolvable:$true] %s21
      %27 = dma.hbm_to_vmem [thread:$0]  %s0, 256, %s22, [#allocation3], 128, 128, 8
    $region5: #{tpu_custom_call.1} parent=1 // pred_fallthru
      _
    // Predicated region
    $region6: #{tpu_custom_call.1} parent=1 // pred_check
      _
    $region7: #{tpu_custom_call.1} parent=1 // pred_check_branch
      %29 = sbr.rel (0) target = $region9
    $region8: #{tpu_custom_call.1} parent=1 // pred_region
      %s31 = ssub.s32 4096, 4096
      %32 = vsyncadd [#allocation6], %s31
      %s33 = sshll.u32 [#allocation5], 4
      %s34 = int_to_ptr.vmem [resolvable:$true] %s33
      %39 = dma.hbm_to_vmem [thread:$0]  %s1, 4096, %s34, [#allocation6], 256, 256, 16
    $region9: #{tpu_custom_call.1} parent=1 // pred_fallthru
      _
    // Predicated region
    $region10: #{tpu_custom_call.1} parent=1 // pred_check
      _
    $region11: #{tpu_custom_call.1} parent=1 // pred_check_branch
      %41 = sbr.rel (0) target = $region13
    $region12: #{tpu_custom_call.1} parent=1 // pred_region
      _
    $region13: #{tpu_custom_call.1} parent=1 // pred_fallthru
      _
    // Predicated region
    $region14: #{tpu_custom_call.1} parent=1 // pred_check
      _
    $region15: #{tpu_custom_call.1} parent=1 // pred_check_branch
      %43 = sbr.rel (0) target = $region17
    $region16: #{tpu_custom_call.1} parent=1 // pred_region
      %s45 = ssub.s32 8192, 8192
      %46 = vsyncadd [#allocation6], %s45
      %s47 = sshll.u32 [#allocation7], 4
      %s48 = int_to_ptr.vmem [resolvable:$true] %s47
      %53 = dma.hbm_to_vmem [thread:$0]  %s3, 8192, %s48, [#allocation6], 256, 256, 16
    $region17: #{tpu_custom_call.1} parent=1 // pred_fallthru
      _
    // Predicated region
    $region18: #{tpu_custom_call.1} parent=1 // pred_check
      _
    $region19: #{tpu_custom_call.1} parent=1 // pred_check_branch
      %55 = sbr.rel (0) target = $region21
    $region20: #{tpu_custom_call.1} parent=1 // pred_region
      _
    $region21: #{tpu_custom_call.1} parent=1 // pred_fallthru
      _
    // Predicated region
    $region22: #{tpu_custom_call.1} parent=1 // pred_check
      _
    $region23: #{tpu_custom_call.1} parent=1 // pred_check_branch
      %57 = sbr.rel (0) target = $region25
    $region24: #{tpu_custom_call.1} parent=1 // pred_region
      %s59 = ssub.s32 4096, 4096
      %60 = vsyncadd [#allocation9], %s59
      %s61 = sshll.u32 [#allocation8], 4
      %s62 = int_to_ptr.vmem [resolvable:$true] %s61
      %67 = dma.hbm_to_vmem [thread:$0]  %s5, 4096, %s62, [#allocation9], 128, 128, 8
    $region25: #{tpu_custom_call.1} parent=1 // pred_fallthru
      _
    // Predicated region
    $region26: #{tpu_custom_call.1} parent=1 // pred_check
      _
    $region27: #{tpu_custom_call.1} parent=1 // pred_check_branch
      %69 = sbr.rel (0) target = $region29
    $region28: #{tpu_custom_call.1} parent=1 // pred_region
      _
    $region29: #{tpu_custom_call.1} parent=1 // pred_fallthru
      _
    // Predicated region
    $region30: #{tpu_custom_call.1} parent=1 // pred_check
      _
    $region31: #{tpu_custom_call.1} parent=1 // pred_check_branch
      %71 = sbr.rel (0) target = $region33
    $region32: #{tpu_custom_call.1} parent=1 // pred_region
      %72 = dma.done [#allocation3], 256
    $region33: #{tpu_custom_call.1} parent=1 // pred_fallthru
      _
    // Predicated region
    $region34: #{tpu_custom_call.1} parent=1 // pred_check
      _
    $region35: #{tpu_custom_call.1} parent=1 // pred_check_branch
      %74 = sbr.rel (0) target = $region37
    $region36: #{tpu_custom_call.1} parent=1 // pred_region
      %75 = dma.done [#allocation6], 4096
    $region37: #{tpu_custom_call.1} parent=1 // pred_fallthru
      _
    // Predicated region
    $region38: #{tpu_custom_call.1} parent=1 // pred_check
      _
    $region39: #{tpu_custom_call.1} parent=1 // pred_check_branch
      %77 = sbr.rel (0) target = $region41
    $region40: #{tpu_custom_call.1} parent=1 // pred_region
      %78 = dma.done [#allocation6], 8192
    $region41: #{tpu_custom_call.1} parent=1 // pred_fallthru
      _
    // Predicated region
    $region42: #{tpu_custom_call.1} parent=1 // pred_check
      _
    $region43: #{tpu_custom_call.1} parent=1 // pred_check_branch
      %80 = sbr.rel (0) target = $region45
    $region44: #{tpu_custom_call.1} parent=1 // pred_region
      %81 = dma.done [#allocation9], 4096
    $region45: #{tpu_custom_call.1} parent=1 // pred_fallthru
      _
    %v82 = vld [vmem:[#allocation2] sm:$0xff]
    %v83 = vld [vmem:[#allocation2 + $0x8] sm:$0xff]
    %v84 = vld [vmem:[#allocation5] sm:$0xff]
    %v85 = vld [vmem:[#allocation5 + $0x8] sm:$0xff]
    %v86 = vld [vmem:[#allocation5 + $0x10] sm:$0xff]
    %v87 = vld [vmem:[#allocation5 + $0x18] sm:$0xff]
    %v88 = vld [vmem:[#allocation5 + $0x20] sm:$0xff]
    %v89 = vld [vmem:[#allocation5 + $0x28] sm:$0xff]
    %v90 = vld [vmem:[#allocation5 + $0x30] sm:$0xff]
    %v91 = vld [vmem:[#allocation5 + $0x38] sm:$0xff]
    %v92 = vld [vmem:[#allocation5 + $0x40] sm:$0xff]
    %v93 = vld [vmem:[#allocation5 + $0x48] sm:$0xff]
    %v94 = vld [vmem:[#allocation5 + $0x50] sm:$0xff]
    %v95 = vld [vmem:[#allocation5 + $0x58] sm:$0xff]
    %v96 = vld [vmem:[#allocation5 + $0x60] sm:$0xff]
    %v97 = vld [vmem:[#allocation5 + $0x68] sm:$0xff]
    %v98 = vld [vmem:[#allocation5 + $0x70] sm:$0xff]
    %v99 = vld [vmem:[#allocation5 + $0x78] sm:$0xff]
    %v100 = vld [vmem:[#allocation5 + $0x80] sm:$0xff]
    %v101 = vld [vmem:[#allocation5 + $0x88] sm:$0xff]
    %v102 = vld [vmem:[#allocation5 + $0x90] sm:$0xff]
    %v103 = vld [vmem:[#allocation5 + $0x98] sm:$0xff]
    %v104 = vld [vmem:[#allocation5 + $0xa0] sm:$0xff]
    %v105 = vld [vmem:[#allocation5 + $0xa8] sm:$0xff]
    %v106 = vld [vmem:[#allocation5 + $0xb0] sm:$0xff]
    %v107 = vld [vmem:[#allocation5 + $0xb8] sm:$0xff]
    %v108 = vld [vmem:[#allocation5 + $0xc0] sm:$0xff]
    %v109 = vld [vmem:[#allocation5 + $0xc8] sm:$0xff]
    %v110 = vld [vmem:[#allocation5 + $0xd0] sm:$0xff]
    %v111 = vld [vmem:[#allocation5 + $0xd8] sm:$0xff]
    %v112 = vld [vmem:[#allocation5 + $0xe0] sm:$0xff]
    %v113 = vld [vmem:[#allocation5 + $0xe8] sm:$0xff]
    %v114 = vld [vmem:[#allocation5 + $0xf0] sm:$0xff]
    %v115 = vld [vmem:[#allocation5 + $0xf8] sm:$0xff]
    %v116 = vld [vmem:[%s2] sm:$0x3]
    %v118 = vlaneseq
    %v119 = vshrl.u32 %v118, 7
    %v120 = vsub.s32 0, %v119
    %v121 = vrot.slane %v116, %v120
    %v122 = vlaneseq
    %v123 = vshrl.u32 %v122, 7
    %v124 = vsub.s32 1, %v123
    %v125 = vrot.slane %v116, %v124
    %128 = vmatprep.subr.mxu0 %v85
    %129 = vmatpush1.msra.mxu0 %v84
    %130 = vmatprep.subr.mxu0 %v87
    %131 = vmatpush1.msra.mxu0 %v86
    %132 = vmatprep.subr.mxu0 %v89
    %133 = vmatpush1.msra.mxu0 %v88
    %134 = vmatprep.subr.mxu0 %v91
    %135 = vmatpush1.msra.mxu0 %v90
    %136 = vmatprep.subr.mxu0 %v93
    %137 = vmatpush1.msra.mxu0 %v92
    %138 = vmatprep.subr.mxu0 %v95
    %139 = vmatpush1.msra.mxu0 %v94
    %140 = vmatprep.subr.mxu0 %v97
    %141 = vmatpush1.msra.mxu0 %v96
    %142 = vmatprep.subr.mxu0 %v99
    %143 = vmatpush1.msra.mxu0 %v98
    %144 = vmatprep.subr.mxu0 %v101
    %145 = vmatpush1.msra.mxu0 %v100
    %146 = vmatprep.subr.mxu0 %v103
    %147 = vmatpush1.msra.mxu0 %v102
    %148 = vmatprep.subr.mxu0 %v105
    %149 = vmatpush1.msra.mxu0 %v104
    %150 = vmatprep.subr.mxu0 %v107
    %151 = vmatpush1.msra.mxu0 %v106
    %152 = vmatprep.subr.mxu0 %v109
    %153 = vmatpush1.msra.mxu0 %v108
    %154 = vmatprep.subr.mxu0 %v111
    %155 = vmatpush1.msra.mxu0 %v110
    %156 = vmatprep.subr.mxu0 %v113
    %157 = vmatpush1.msra.mxu0 %v112
    %158 = vmatprep.subr.mxu0 %v115
    %159 = vmatpush1.msra.mxu0 %v114
    %160 = vmatprep.subr.mxu0 0.0
    %161 = vmatpush1.msra.mxu0 0.0
    %162 = vmatprep.subr.mxu0 0.0
    %163 = vmatpush1.msra.mxu0 0.0
    %164 = vmatprep.subr.mxu0 0.0
    %165 = vmatpush1.msra.mxu0 0.0
    %166 = vmatprep.subr.mxu0 0.0
    %167 = vmatpush1.msra.mxu0 0.0
    %168 = vmatprep.subr.mxu0 0.0
    %169 = vmatpush1.msra.mxu0 0.0
    %170 = vmatprep.subr.mxu0 0.0
    %171 = vmatpush1.msra.mxu0 0.0
    %172 = vmatprep.subr.mxu0 0.0
    %173 = vmatpush1.msra.mxu0 0.0
    %174 = vmatprep.subr.mxu0 0.0
    %175 = vmatpush1.msra.mxu0 0.0
    %176 = vmatprep.subr.mxu0 0.0
    %177 = vmatpush1.msra.mxu0 0.0
    %178 = vmatprep.subr.mxu0 0.0
    %179 = vmatpush1.msra.mxu0 0.0
    %180 = vmatprep.subr.mxu0 0.0
    %181 = vmatpush1.msra.mxu0 0.0
    %182 = vmatprep.subr.mxu0 0.0
    %183 = vmatpush1.msra.mxu0 0.0
    %184 = vmatprep.subr.mxu0 0.0
    %185 = vmatpush1.msra.mxu0 0.0
    %186 = vmatprep.subr.mxu0 0.0
    %187 = vmatpush1.msra.mxu0 0.0
    %188 = vmatprep.subr.mxu0 0.0
    %189 = vmatpush1.msra.mxu0 0.0
    %190 = vmatprep.subr.mxu0 0.0
    %191 = vmatpush1.msra.mxu0 0.0
    %192 = vmatprep.mubr.f32.mxu0 0.0
    %193 = vmatmul.mubr.f32.gmra.mrb[0].mxu0 %v82
    %v194 = vpop.f32.mrb[0].mxu0
    %v195 = vadd.f32 %v121, %v194
    %v196 = vpop.f32.mrb[0].mxu0
    %v197 = vadd.f32 %v125, %v196
    %198 = vmatprep.mubr.f32.mxu0 0.0
    %199 = vmatmul.mubr.f32.gmra.mrb[0].mxu0 %v83
    %v200 = vpop.f32.mrb[0].mxu0
    %v201 = vadd.f32 %v121, %v200
    %v202 = vpop.f32.mrb[0].mxu0
    %v203 = vadd.f32 %v125, %v202
    %204 = vdwg.mxu0
    %v205 = vmax.f32 %v195, 0.0
    %v206 = vmax.f32 %v197, 0.0
    %v207 = vmax.f32 %v201, 0.0
    %v208 = vmax.f32 %v203, 0.0
    %v209 = vld [vmem:[#allocation7] sm:$0xff]
    %v210 = vld [vmem:[#allocation7 + $0x8] sm:$0xff]
    %v211 = vld [vmem:[#allocation7 + $0x10] sm:$0xff]
    %v212 = vld [vmem:[#allocation7 + $0x18] sm:$0xff]
    %v213 = vld [vmem:[#allocation7 + $0x20] sm:$0xff]
    %v214 = vld [vmem:[#allocation7 + $0x28] sm:$0xff]
    %v215 = vld [vmem:[#allocation7 + $0x30] sm:$0xff]
    %v216 = vld [vmem:[#allocation7 + $0x38] sm:$0xff]
    %v217 = vld [vmem:[#allocation7 + $0x40] sm:$0xff]
    %v218 = vld [vmem:[#allocation7 + $0x48] sm:$0xff]
    %v219 = vld [vmem:[#allocation7 + $0x50] sm:$0xff]
    %v220 = vld [vmem:[#allocation7 + $0x58] sm:$0xff]
    %v221 = vld [vmem:[#allocation7 + $0x60] sm:$0xff]
    %v222 = vld [vmem:[#allocation7 + $0x68] sm:$0xff]
    %v223 = vld [vmem:[#allocation7 + $0x70] sm:$0xff]
    %v224 = vld [vmem:[#allocation7 + $0x78] sm:$0xff]
    %v225 = vld [vmem:[#allocation7 + $0x80] sm:$0xff]
    %v226 = vld [vmem:[#allocation7 + $0x88] sm:$0xff]
    %v227 = vld [vmem:[#allocation7 + $0x90] sm:$0xff]
    %v228 = vld [vmem:[#allocation7 + $0x98] sm:$0xff]
    %v229 = vld [vmem:[#allocation7 + $0xa0] sm:$0xff]
    %v230 = vld [vmem:[#allocation7 + $0xa8] sm:$0xff]
    %v231 = vld [vmem:[#allocation7 + $0xb0] sm:$0xff]
    %v232 = vld [vmem:[#allocation7 + $0xb8] sm:$0xff]
    %v233 = vld [vmem:[#allocation7 + $0xc0] sm:$0xff]
    %v234 = vld [vmem:[#allocation7 + $0xc8] sm:$0xff]
    %v235 = vld [vmem:[#allocation7 + $0xd0] sm:$0xff]
    %v236 = vld [vmem:[#allocation7 + $0xd8] sm:$0xff]
    %v237 = vld [vmem:[#allocation7 + $0xe0] sm:$0xff]
    %v238 = vld [vmem:[#allocation7 + $0xe8] sm:$0xff]
    %v239 = vld [vmem:[#allocation7 + $0xf0] sm:$0xff]
    %v240 = vld [vmem:[#allocation7 + $0xf8] sm:$0xff]
    %v241 = vld [vmem:[#allocation7 + $0x100] sm:$0xff]
    %v242 = vld [vmem:[#allocation7 + $0x108] sm:$0xff]
    %v243 = vld [vmem:[#allocation7 + $0x110] sm:$0xff]
    %v244 = vld [vmem:[#allocation7 + $0x118] sm:$0xff]
    %v245 = vld [vmem:[#allocation7 + $0x120] sm:$0xff]
    %v246 = vld [vmem:[#allocation7 + $0x128] sm:$0xff]
    %v247 = vld [vmem:[#allocation7 + $0x130] sm:$0xff]
    %v248 = vld [vmem:[#allocation7 + $0x138] sm:$0xff]
    %v249 = vld [vmem:[#allocation7 + $0x140] sm:$0xff]
    %v250 = vld [vmem:[#allocation7 + $0x148] sm:$0xff]
    %v251 = vld [vmem:[#allocation7 + $0x150] sm:$0xff]
    %v252 = vld [vmem:[#allocation7 + $0x158] sm:$0xff]
    %v253 = vld [vmem:[#allocation7 + $0x160] sm:$0xff]
    %v254 = vld [vmem:[#allocation7 + $0x168] sm:$0xff]
    %v255 = vld [vmem:[#allocation7 + $0x170] sm:$0xff]
    %v256 = vld [vmem:[#allocation7 + $0x178] sm:$0xff]
    %v257 = vld [vmem:[#allocation7 + $0x180] sm:$0xff]
    %v258 = vld [vmem:[#allocation7 + $0x188] sm:$0xff]
    %v259 = vld [vmem:[#allocation7 + $0x190] sm:$0xff]
    %v260 = vld [vmem:[#allocation7 + $0x198] sm:$0xff]
    %v261 = vld [vmem:[#allocation7 + $0x1a0] sm:$0xff]
    %v262 = vld [vmem:[#allocation7 + $0x1a8] sm:$0xff]
    %v263 = vld [vmem:[#allocation7 + $0x1b0] sm:$0xff]
    %v264 = vld [vmem:[#allocation7 + $0x1b8] sm:$0xff]
    %v265 = vld [vmem:[#allocation7 + $0x1c0] sm:$0xff]
    %v266 = vld [vmem:[#allocation7 + $0x1c8] sm:$0xff]
    %v267 = vld [vmem:[#allocation7 + $0x1d0] sm:$0xff]
    %v268 = vld [vmem:[#allocation7 + $0x1d8] sm:$0xff]
    %v269 = vld [vmem:[#allocation7 + $0x1e0] sm:$0xff]
    %v270 = vld [vmem:[#allocation7 + $0x1e8] sm:$0xff]
    %v271 = vld [vmem:[#allocation7 + $0x1f0] sm:$0xff]
    %v272 = vld [vmem:[#allocation7 + $0x1f8] sm:$0xff]
    %v273 = vld [vmem:[%s4] sm:$0x3]
    %v275 = vlaneseq
    %v276 = vshrl.u32 %v275, 7
    %v277 = vsub.s32 0, %v276
    %v278 = vrot.slane %v273, %v277
    %v279 = vlaneseq
    %v280 = vshrl.u32 %v279, 7
    %v281 = vsub.s32 1, %v280
    %v282 = vrot.slane %v273, %v281
    %285 = vmatprep.subr.mxu0 %v210
    %286 = vmatpush1.msra.mxu0 %v209
    %287 = vmatprep.subr.mxu0 %v212
    %288 = vmatpush1.msra.mxu0 %v211
    %289 = vmatprep.subr.mxu0 %v214
    %290 = vmatpush1.msra.mxu0 %v213
    %291 = vmatprep.subr.mxu0 %v216
    %292 = vmatpush1.msra.mxu0 %v215
    %293 = vmatprep.subr.mxu0 %v218
    %294 = vmatpush1.msra.mxu0 %v217
    %295 = vmatprep.subr.mxu0 %v220
    %296 = vmatpush1.msra.mxu0 %v219
    %297 = vmatprep.subr.mxu0 %v222
    %298 = vmatpush1.msra.mxu0 %v221
    %299 = vmatprep.subr.mxu0 %v224
    %300 = vmatpush1.msra.mxu0 %v223
    %301 = vmatprep.subr.mxu0 %v226
    %302 = vmatpush1.msra.mxu0 %v225
    %303 = vmatprep.subr.mxu0 %v228
    %304 = vmatpush1.msra.mxu0 %v227
    %305 = vmatprep.subr.mxu0 %v230
    %306 = vmatpush1.msra.mxu0 %v229
    %307 = vmatprep.subr.mxu0 %v232
    %308 = vmatpush1.msra.mxu0 %v231
    %309 = vmatprep.subr.mxu0 %v234
    %310 = vmatpush1.msra.mxu0 %v233
    %311 = vmatprep.subr.mxu0 %v236
    %312 = vmatpush1.msra.mxu0 %v235
    %313 = vmatprep.subr.mxu0 %v238
    %314 = vmatpush1.msra.mxu0 %v237
    %315 = vmatprep.subr.mxu0 %v240
    %316 = vmatpush1.msra.mxu0 %v239
    %317 = vmatprep.subr.mxu0 %v242
    %318 = vmatpush1.msra.mxu0 %v241
    %319 = vmatprep.subr.mxu0 %v244
    %320 = vmatpush1.msra.mxu0 %v243
    %321 = vmatprep.subr.mxu0 %v246
    %322 = vmatpush1.msra.mxu0 %v245
    %323 = vmatprep.subr.mxu0 %v248
    %324 = vmatpush1.msra.mxu0 %v247
    %325 = vmatprep.subr.mxu0 %v250
    %326 = vmatpush1.msra.mxu0 %v249
    %327 = vmatprep.subr.mxu0 %v252
    %328 = vmatpush1.msra.mxu0 %v251
    %329 = vmatprep.subr.mxu0 %v254
    %330 = vmatpush1.msra.mxu0 %v253
    %331 = vmatprep.subr.mxu0 %v256
    %332 = vmatpush1.msra.mxu0 %v255
    %333 = vmatprep.subr.mxu0 %v258
    %334 = vmatpush1.msra.mxu0 %v257
    %335 = vmatprep.subr.mxu0 %v260
    %336 = vmatpush1.msra.mxu0 %v259
    %337 = vmatprep.subr.mxu0 %v262
    %338 = vmatpush1.msra.mxu0 %v261
    %339 = vmatprep.subr.mxu0 %v264
    %340 = vmatpush1.msra.mxu0 %v263
    %341 = vmatprep.subr.mxu0 %v266
    %342 = vmatpush1.msra.mxu0 %v265
    %343 = vmatprep.subr.mxu0 %v268
    %344 = vmatpush1.msra.mxu0 %v267
    %345 = vmatprep.subr.mxu0 %v270
    %346 = vmatpush1.msra.mxu0 %v269
    %347 = vmatprep.subr.mxu0 %v272
    %348 = vmatpush1.msra.mxu0 %v271
    %349 = vmatprep.mubr.f32.mxu0 %v206
    %350 = vmatmul.mubr.f32.gmra.mrb[0].mxu0 %v205
    %v351 = vpop.f32.mrb[0].mxu0
    %v352 = vadd.f32 %v278, %v351
    %v353 = vpop.f32.mrb[0].mxu0
    %v354 = vadd.f32 %v282, %v353
    %355 = vmatprep.mubr.f32.mxu0 %v208
    %356 = vmatmul.mubr.f32.gmra.mrb[0].mxu0 %v207
    %v357 = vpop.f32.mrb[0].mxu0
    %v358 = vadd.f32 %v278, %v357
    %v359 = vpop.f32.mrb[0].mxu0
    %v360 = vadd.f32 %v282, %v359
    %361 = vdwg.mxu0
    %v362 = vmax.f32 %v352, 0.0
    %v363 = vmax.f32 %v354, 0.0
    %v364 = vmax.f32 %v358, 0.0
    %v365 = vmax.f32 %v360, 0.0
    %v366 = vld [vmem:[#allocation8] sm:$0xff]
    %v367 = vld [vmem:[#allocation8 + $0x8] sm:$0xff]
    %v368 = vld [vmem:[#allocation8 + $0x10] sm:$0xff]
    %v369 = vld [vmem:[#allocation8 + $0x18] sm:$0xff]
    %v370 = vld [vmem:[#allocation8 + $0x20] sm:$0xff]
    %v371 = vld [vmem:[#allocation8 + $0x28] sm:$0xff]
    %v372 = vld [vmem:[#allocation8 + $0x30] sm:$0xff]
    %v373 = vld [vmem:[#allocation8 + $0x38] sm:$0xff]
    %v374 = vld [vmem:[#allocation8 + $0x40] sm:$0xff]
    %v375 = vld [vmem:[#allocation8 + $0x48] sm:$0xff]
    %v376 = vld [vmem:[#allocation8 + $0x50] sm:$0xff]
    %v377 = vld [vmem:[#allocation8 + $0x58] sm:$0xff]
    %v378 = vld [vmem:[#allocation8 + $0x60] sm:$0xff]
    %v379 = vld [vmem:[#allocation8 + $0x68] sm:$0xff]
    %v380 = vld [vmem:[#allocation8 + $0x70] sm:$0xff]
    %v381 = vld [vmem:[#allocation8 + $0x78] sm:$0xff]
    %v382 = vld [vmem:[#allocation8 + $0x80] sm:$0xff]
    %v383 = vld [vmem:[#allocation8 + $0x88] sm:$0xff]
    %v384 = vld [vmem:[#allocation8 + $0x90] sm:$0xff]
    %v385 = vld [vmem:[#allocation8 + $0x98] sm:$0xff]
    %v386 = vld [vmem:[#allocation8 + $0xa0] sm:$0xff]
    %v387 = vld [vmem:[#allocation8 + $0xa8] sm:$0xff]
    %v388 = vld [vmem:[#allocation8 + $0xb0] sm:$0xff]
    %v389 = vld [vmem:[#allocation8 + $0xb8] sm:$0xff]
    %v390 = vld [vmem:[#allocation8 + $0xc0] sm:$0xff]
    %v391 = vld [vmem:[#allocation8 + $0xc8] sm:$0xff]
    %v392 = vld [vmem:[#allocation8 + $0xd0] sm:$0xff]
    %v393 = vld [vmem:[#allocation8 + $0xd8] sm:$0xff]
    %v394 = vld [vmem:[#allocation8 + $0xe0] sm:$0xff]
    %v395 = vld [vmem:[#allocation8 + $0xe8] sm:$0xff]
    %v396 = vld [vmem:[#allocation8 + $0xf0] sm:$0xff]
    %v397 = vld [vmem:[#allocation8 + $0xf8] sm:$0xff]
    %v398 = vld [vmem:[%s6] sm:$0x1]
    %v400 = vlaneseq
    %v401 = vshrl.u32 %v400, 7
    %v402 = vsub.s32 0, %v401
    %v403 = vrot.slane %v398, %v402
    %405 = vmatprep.subr.mxu0 0.0
    %406 = vmatpush1.msra.mxu0 %v366
    %407 = vmatprep.subr.mxu0 0.0
    %408 = vmatpush1.msra.mxu0 %v367
    %409 = vmatprep.subr.mxu0 0.0
    %410 = vmatpush1.msra.mxu0 %v368
    %411 = vmatprep.subr.mxu0 0.0
    %412 = vmatpush1.msra.mxu0 %v369
    %413 = vmatprep.subr.mxu0 0.0
    %414 = vmatpush1.msra.mxu0 %v370
    %415 = vmatprep.subr.mxu0 0.0
    %416 = vmatpush1.msra.mxu0 %v371
    %417 = vmatprep.subr.mxu0 0.0
    %418 = vmatpush1.msra.mxu0 %v372
    %419 = vmatprep.subr.mxu0 0.0
    %420 = vmatpush1.msra.mxu0 %v373
    %421 = vmatprep.subr.mxu0 0.0
    %422 = vmatpush1.msra.mxu0 %v374
    %423 = vmatprep.subr.mxu0 0.0
    %424 = vmatpush1.msra.mxu0 %v375
    %425 = vmatprep.subr.mxu0 0.0
    %426 = vmatpush1.msra.mxu0 %v376
    %427 = vmatprep.subr.mxu0 0.0
    %428 = vmatpush1.msra.mxu0 %v377
    %429 = vmatprep.subr.mxu0 0.0
    %430 = vmatpush1.msra.mxu0 %v378
    %431 = vmatprep.subr.mxu0 0.0
    %432 = vmatpush1.msra.mxu0 %v379
    %433 = vmatprep.subr.mxu0 0.0
    %434 = vmatpush1.msra.mxu0 %v380
    %435 = vmatprep.subr.mxu0 0.0
    %436 = vmatpush1.msra.mxu0 %v381
    %437 = vmatprep.subr.mxu0 0.0
    %438 = vmatpush1.msra.mxu0 %v382
    %439 = vmatprep.subr.mxu0 0.0
    %440 = vmatpush1.msra.mxu0 %v383
    %441 = vmatprep.subr.mxu0 0.0
    %442 = vmatpush1.msra.mxu0 %v384
    %443 = vmatprep.subr.mxu0 0.0
    %444 = vmatpush1.msra.mxu0 %v385
    %445 = vmatprep.subr.mxu0 0.0
    %446 = vmatpush1.msra.mxu0 %v386
    %447 = vmatprep.subr.mxu0 0.0
    %448 = vmatpush1.msra.mxu0 %v387
    %449 = vmatprep.subr.mxu0 0.0
    %450 = vmatpush1.msra.mxu0 %v388
    %451 = vmatprep.subr.mxu0 0.0
    %452 = vmatpush1.msra.mxu0 %v389
    %453 = vmatprep.subr.mxu0 0.0
    %454 = vmatpush1.msra.mxu0 %v390
    %455 = vmatprep.subr.mxu0 0.0
    %456 = vmatpush1.msra.mxu0 %v391
    %457 = vmatprep.subr.mxu0 0.0
    %458 = vmatpush1.msra.mxu0 %v392
    %459 = vmatprep.subr.mxu0 0.0
    %460 = vmatpush1.msra.mxu0 %v393
    %461 = vmatprep.subr.mxu0 0.0
    %462 = vmatpush1.msra.mxu0 %v394
    %463 = vmatprep.subr.mxu0 0.0
    %464 = vmatpush1.msra.mxu0 %v395
    %465 = vmatprep.subr.mxu0 0.0
    %466 = vmatpush1.msra.mxu0 %v396
    %467 = vmatprep.subr.mxu0 0.0
    %468 = vmatpush1.msra.mxu0 %v397
    %469 = vmatprep.mubr.f32.mxu0 %v363
    %470 = vmatmul.mubr.f32.gmra.mrb[0].mxu0 %v362
    %v471 = vpop.f32.mrb[0].mxu0
    %v472 = vadd.f32 %v403, %v471
    %v473 = vpop.f32.mrb[0].mxu0
    %474 = vmatprep.mubr.f32.mxu0 %v365
    %475 = vmatmul.mubr.f32.gmra.mrb[0].mxu0 %v364
    %v476 = vpop.f32.mrb[0].mxu0
    %v477 = vadd.f32 %v403, %v476
    %v478 = vpop.f32.mrb[0].mxu0
    %479 = vdwg.mxu0
    %v480 = vmax.f32 %v472, 0.0
    %v481 = vmax.f32 %v477, 0.0
    %482 = vst [vmem:[#allocation10] sm:$0xff] %v480
    %483 = vst [vmem:[#allocation10 + $0x8] sm:$0xff] %v481
    // Predicated region
    $region46: #{tpu_custom_call.1} parent=1 // pred_check
      _
    $region47: #{tpu_custom_call.1} parent=1 // pred_check_branch
      %485 = sbr.rel (0) target = $region49
    $region48: #{tpu_custom_call.1} parent=1 // pred_region
      %s487 = ssub.s32 256, 256
      %488 = vsyncadd [#allocation4], %s487
      %s489 = sshll.u32 [#allocation10], 4
      %s490 = int_to_ptr.vmem [resolvable:$true] %s489
      %495 = dma.vmem_to_hbm [thread:$0]  %s490, 256, %s7, [#allocation4], 128, 128, 8
    $region49: #{tpu_custom_call.1} parent=1 // pred_fallthru
      _
    // Predicated region
    $region50: #{tpu_custom_call.1} parent=1 // pred_check
      _
    $region51: #{tpu_custom_call.1} parent=1 // pred_check_branch
      %497 = sbr.rel (0) target = $region53
    $region52: #{tpu_custom_call.1} parent=1 // pred_region
      %498 = dma.done [#allocation4], 256
    $region53: #{tpu_custom_call.1} parent=1 // pred_fallthru
      _
    %499 = vsyncpa [#allocation3], 1
    %500 = vsyncpa [#allocation6], 1
    %501 = vsyncpa [#allocation9], 1
    %502 = vsyncpa [#allocation4], 1

</llo_original>
